<compile_context>
chip_gen: v7x
topology: tpu7x:2x2x1
jax: 0.10.0
libtpu: 0.0.40
codegen_flags: <defaults>
</compile_context>

<pallas_src>
import functools

import jax
import jax.numpy as jnp
from jax import lax
from jax.experimental import pallas as pl
from jax.experimental.pallas import tpu as pltpu


def _round_up(x, m):
    return ((x + m - 1) // m) * m


def _choose_tiling(B, max_tile_b):
    """Pick (TILE_B, B_pad, num_tiles). TILE_B is a multiple of 128."""
    b128 = _round_up(B, 128)
    if b128 > max_tile_b:
        tile_b = max_tile_b
    elif b128 >= 256:
        # Split into >= 2 tiles so both v7x TensorCores get work (the grid
        # axis is marked "parallel"); harmless on 1-TC v5e/v6e.
        tile_b = ((b128 // 2) // 128) * 128
    else:
        tile_b = b128  # == 128
    b_pad = _round_up(B, tile_b)
    return tile_b, b_pad, b_pad // tile_b


def _graphrec_kernel(xu_ref, xm_ref, wu_ref, wm_ref, bu_ref, bm_ref, out_ref):
    # xu_ref: [TILE_B, Fu]   user activations (batch tile)
    # xm_ref: [TILE_B, Fm]   movie activations (batch tile)
    # wu_ref: [MF_PAD, Fu]   user weights^T   (resident across tiles)
    # wm_ref: [MF_PAD, Fm]   movie weights^T  (resident across tiles)
    # bu_ref/bm_ref: [MF_PAD, 1] biases
    # out_ref: [3, TILE_B]   lane-dense per-batch-element results
    dn = (((1,), (1,)), ((), ()))  # contract feature axes -> [MF_PAD, TILE_B]

    u = lax.dot_general(wu_ref[...], xu_ref[...], dn,
                        preferred_element_type=jnp.float32) + bu_ref[...]
    m = lax.dot_general(wm_ref[...], xm_ref[...], dn,
                        preferred_element_type=jnp.float32) + bm_ref[...]

    # relu-split identity: cat(relu(u),relu(-u)) . cat(relu(m),relu(-m)) == max(u*m, 0)
    prod = jnp.maximum(u * m, 0.0)

    # One combined store (pred row, ||user_mf||^2 row, ||movie_mf||^2 row).
    out_ref[...] = jnp.concatenate(
        [jnp.sum(prod, axis=0, keepdims=True),
         jnp.sum(u * u, axis=0, keepdims=True),
         jnp.sum(m * m, axis=0, keepdims=True)], axis=0)


@functools.partial(jax.jit, static_argnames=("max_tile_b",))
def graphrec_forward(user_input, movie_input, params, user_weight, movie_weight,
                     *, max_tile_b=2048):
    """Returns (pred [B], regularizer scalar) matching GraphRecModel.forward."""
    B, Fu = user_input.shape
    _, Fm = movie_input.shape
    mf = params["user_w"].shape[1]

    f32 = jnp.float32
    MF_PAD = _round_up(mf, 8)                     # sublane-align the mf axis
    TILE_B, B_pad, num_tiles = _choose_tiling(B, max_tile_b)

    # ---- activations: fed directly; pad batch rows only if needed ----
    xu = user_input.astype(f32)
    xm = movie_input.astype(f32)
    if B_pad != B:
        xu = jnp.pad(xu, ((0, B_pad - B), (0, 0)))
        xm = jnp.pad(xm, ((0, B_pad - B), (0, 0)))

    # ---- parameter prep (tiny, fused under jit) ----
    wu = jnp.pad(params["user_w"].T.astype(f32), ((0, MF_PAD - mf), (0, 0)))    # [MF_PAD, Fu]
    wm = jnp.pad(params["movie_w"].T.astype(f32), ((0, MF_PAD - mf), (0, 0)))   # [MF_PAD, Fm]
    bu = jnp.pad(params["user_b"].reshape(mf, 1).astype(f32), ((0, MF_PAD - mf), (0, 0)))
    bm = jnp.pad(params["movie_b"].reshape(mf, 1).astype(f32), ((0, MF_PAD - mf), (0, 0)))

    out = pl.pallas_call(
        _graphrec_kernel,
        out_shape=jax.ShapeDtypeStruct((3, B_pad), jnp.float32),
        grid_spec=pltpu.PrefetchScalarGridSpec(
            num_scalar_prefetch=0,
            grid=(num_tiles,),
            in_specs=[
                pl.BlockSpec((TILE_B, Fu), lambda i: (i, 0)),   # user batch tile
                pl.BlockSpec((TILE_B, Fm), lambda i: (i, 0)),   # movie batch tile
                pl.BlockSpec((MF_PAD, Fu), lambda i: (0, 0)),   # user weights (resident)
                pl.BlockSpec((MF_PAD, Fm), lambda i: (0, 0)),   # movie weights (resident)
                pl.BlockSpec((MF_PAD, 1), lambda i: (0, 0)),    # user bias
                pl.BlockSpec((MF_PAD, 1), lambda i: (0, 0)),    # movie bias
            ],
            out_specs=pl.BlockSpec((3, TILE_B), lambda i: (0, i)),
        ),
        compiler_params=pltpu.CompilerParams(
            dimension_semantics=("parallel",),
            vmem_limit_bytes=32 * 1024 * 1024,   # safe on v5e/v6e/v7x at default tile
        ),
    )(xu, xm, wu, wm, bu, bm)

    pred = out[0, :B]
    # Regularizer weights applied outside the kernel (traced scalars -> no
    # per-value recompiles); slice to :B so padded columns never contribute.
    reg = (user_weight * 0.5 * jnp.sum(out[1, :B])
           + movie_weight * 0.5 * jnp.sum(out[2, :B]))
    return pred, reg


def init_params(key, n_features_user, n_features_movie, mf_size):
    """Matches GraphRecModel.__initialize_weights: N(0, sqrt(2/(fan_in+fan_out)))
    for weights, N(0, 0.001) for biases. Stored transposed as [in, out]."""
    k1, k2, k3, k4 = jax.random.split(key, 4)
    std_u = jnp.sqrt(2.0 / (n_features_user + mf_size))
    std_m = jnp.sqrt(2.0 / (n_features_movie + mf_size))
    return {
        "user_w": (std_u * jax.random.normal(k1, (n_features_user, mf_size))).astype(jnp.float32),
        "user_b": (0.001 * jax.random.normal(k2, (1, mf_size))).astype(jnp.float32),
        "movie_w": (std_m * jax.random.normal(k3, (n_features_movie, mf_size))).astype(jnp.float32),
        "movie_b": (0.001 * jax.random.normal(k4, (1, mf_size))).astype(jnp.float32),
    }


def _reference(user_input, movie_input, params, user_weight, movie_weight):
    # Direct transcription of the PyTorch forward (cat-based relu split).
    user_mf = user_input @ params["user_w"] + params["user_b"]
    movie_mf = movie_input @ params["movie_w"] + params["movie_b"]
    u_cat = jnp.concatenate([jnp.maximum(user_mf, 0), jnp.maximum(-user_mf, 0)], axis=1)
    m_cat = jnp.concatenate([jnp.maximum(movie_mf, 0), jnp.maximum(-movie_mf, 0)], axis=1)
    pred = jnp.sum(u_cat * m_cat, axis=1)
    reg = user_weight * jnp.sum(u_cat ** 2) / 2 + movie_weight * jnp.sum(m_cat ** 2) / 2
    return pred, reg


if __name__ == "__main__":
    B = 8              # batch
    FU = 16            # dataset.n_features_user
    FM = 24            # dataset.n_features_movie
    MF = 32            # args.mf_size
    USER_WEIGHT = 0.05   # args.user_weight
    MOVIE_WEIGHT = 0.02  # args.movie_weight

    key = jax.random.PRNGKey(0)
    kp, ku, km = jax.random.split(key, 3)
    params = init_params(kp, FU, FM, MF)
    user_input = jax.random.normal(ku, (B, FU), dtype=jnp.float32)
    movie_input = jax.random.normal(km, (B, FM), dtype=jnp.float32)

    pred, reg = graphrec_forward(user_input, movie_input, params,
                                 jnp.float32(USER_WEIGHT), jnp.float32(MOVIE_WEIGHT))
    jax.block_until_ready((pred, reg))

    # Sanity check against a pure-JAX reference of the PyTorch forward.
    pred_ref, reg_ref = _reference(user_input, movie_input, params,
                                   USER_WEIGHT, MOVIE_WEIGHT)
    assert jnp.allclose(pred, pred_ref, atol=1e-5, rtol=1e-5), (pred, pred_ref)
    assert jnp.allclose(reg, reg_ref, atol=1e-5, rtol=1e-5), (reg, reg_ref)

    print("KERNEL_OK")
</pallas_src>

<mosaic_0001>
module attributes {stable_mosaic.version = 11 : i64} {
  func.func @_graphrec_kernel(%arg0: i32, %arg1: memref<128x16xf32, #tpu.memory_space<vmem>>, %arg2: memref<128x24xf32, #tpu.memory_space<vmem>>, %arg3: memref<32x16xf32, #tpu.memory_space<vmem>>, %arg4: memref<32x24xf32, #tpu.memory_space<vmem>>, %arg5: memref<32x1xf32, #tpu.memory_space<vmem>>, %arg6: memref<32x1xf32, #tpu.memory_space<vmem>>, %arg7: memref<3x128xf32, #tpu.memory_space<vmem>>) attributes {dimension_semantics = [#tpu.dimension_semantics<parallel>], iteration_bounds = array<i64: 1>, scalar_prefetch = 0 : i64, scratch_operands = 0 : i64, tpu.core_type = #tpu.core_type<tc>, window_params = [{transform_indices = @transform_0, window_bounds = array<i64: 128, 16>}, {transform_indices = @transform_1, window_bounds = array<i64: 128, 24>}, {pipeline_mode = #tpu.pipeline_mode<synchronous>, transform_indices = @transform_2, window_bounds = array<i64: 32, 16>}, {pipeline_mode = #tpu.pipeline_mode<synchronous>, transform_indices = @transform_3, window_bounds = array<i64: 32, 24>}, {pipeline_mode = #tpu.pipeline_mode<synchronous>, transform_indices = @transform_4, window_bounds = array<i64: 32, 1>}, {pipeline_mode = #tpu.pipeline_mode<synchronous>, transform_indices = @transform_5, window_bounds = array<i64: 32, 1>}, {transform_indices = @transform_6, window_bounds = array<i64: 3, 128>}]} {
    %c0 = arith.constant 0 : index
    %c0_0 = arith.constant 0 : index
    %0 = vector.load %arg3[%c0, %c0_0] : memref<32x16xf32, #tpu.memory_space<vmem>>, vector<32x16xf32>
    %c0_1 = arith.constant 0 : index
    %c0_2 = arith.constant 0 : index
    %1 = vector.load %arg1[%c0_1, %c0_2] : memref<128x16xf32, #tpu.memory_space<vmem>>, vector<128x16xf32>
    %cst = arith.constant dense<0.000000e+00> : vector<32x128xf32>
    %2 = tpu.matmul %0, %1, %cst {dimension_numbers = #tpu.dot_dimension_numbers<[1], [1], [0], [0], [0, 0, 1, 0], [], []>} : vector<32x16xf32>, vector<128x16xf32>, vector<32x128xf32> -> vector<32x128xf32>
    %c0_3 = arith.constant 0 : index
    %c0_4 = arith.constant 0 : index
    %3 = vector.load %arg5[%c0_3, %c0_4] : memref<32x1xf32, #tpu.memory_space<vmem>>, vector<32x1xf32>
    %4 = vector.broadcast %3 : vector<32x1xf32> to vector<32x128xf32>
    %5 = arith.addf %2, %4 : vector<32x128xf32>
    %c0_5 = arith.constant 0 : index
    %c0_6 = arith.constant 0 : index
    %6 = vector.load %arg4[%c0_5, %c0_6] : memref<32x24xf32, #tpu.memory_space<vmem>>, vector<32x24xf32>
    %c0_7 = arith.constant 0 : index
    %c0_8 = arith.constant 0 : index
    %7 = vector.load %arg2[%c0_7, %c0_8] : memref<128x24xf32, #tpu.memory_space<vmem>>, vector<128x24xf32>
    %cst_9 = arith.constant dense<0.000000e+00> : vector<32x128xf32>
    %8 = tpu.matmul %6, %7, %cst_9 {dimension_numbers = #tpu.dot_dimension_numbers<[1], [1], [0], [0], [0, 0, 1, 0], [], []>} : vector<32x24xf32>, vector<128x24xf32>, vector<32x128xf32> -> vector<32x128xf32>
    %c0_10 = arith.constant 0 : index
    %c0_11 = arith.constant 0 : index
    %9 = vector.load %arg6[%c0_10, %c0_11] : memref<32x1xf32, #tpu.memory_space<vmem>>, vector<32x1xf32>
    %10 = vector.broadcast %9 : vector<32x1xf32> to vector<32x128xf32>
    %11 = arith.addf %8, %10 : vector<32x128xf32>
    %12 = arith.mulf %5, %11 : vector<32x128xf32>
    %cst_12 = arith.constant 0.000000e+00 : f32
    %13 = vector.broadcast %cst_12 : f32 to vector<32x128xf32>
    %14 = arith.maximumf %12, %13 : vector<32x128xf32>
    %cst_13 = arith.constant dense<0.000000e+00> : vector<128xf32>
    %15 = vector.multi_reduction <add>, %14, %cst_13 [0] : vector<32x128xf32> to vector<128xf32>
    %16 = vector.shape_cast %15 : vector<128xf32> to vector<1x128xf32>
    %17 = arith.mulf %5, %5 : vector<32x128xf32>
    %cst_14 = arith.constant dense<0.000000e+00> : vector<128xf32>
    %18 = vector.multi_reduction <add>, %17, %cst_14 [0] : vector<32x128xf32> to vector<128xf32>
    %19 = vector.shape_cast %18 : vector<128xf32> to vector<1x128xf32>
    %20 = arith.mulf %11, %11 : vector<32x128xf32>
    %cst_15 = arith.constant dense<0.000000e+00> : vector<128xf32>
    %21 = vector.multi_reduction <add>, %20, %cst_15 [0] : vector<32x128xf32> to vector<128xf32>
    %22 = vector.shape_cast %21 : vector<128xf32> to vector<1x128xf32>
    %23 = tpu.concatenate %16, %19, %22 in 0 : vector<1x128xf32>, vector<1x128xf32>, vector<1x128xf32> -> vector<3x128xf32>
    %c0_16 = arith.constant 0 : index
    %c0_17 = arith.constant 0 : index
    %24 = vector.load %arg7[%c0_16, %c0_17] : memref<3x128xf32, #tpu.memory_space<vmem>>, vector<3x128xf32>
    tpu.vector_store %arg7[%c0_16, %c0_17], %23 {strides = array<i32>} : memref<3x128xf32, #tpu.memory_space<vmem>>, vector<3x128xf32>,
    return
  }
  func.func @transform_0(%arg0: i32) -> (i32, i32) {
    %c0_i32 = arith.constant 0 : i32
    %c0_i32_0 = arith.constant 0 : i32
    return %arg0, %c0_i32 : i32, i32
  }
  func.func @transform_1(%arg0: i32) -> (i32, i32) {
    %c0_i32 = arith.constant 0 : i32
    %c0_i32_0 = arith.constant 0 : i32
    return %arg0, %c0_i32 : i32, i32
  }
  func.func @transform_2(%arg0: i32) -> (i32, i32) {
    %c0_i32 = arith.constant 0 : i32
    %c0_i32_0 = arith.constant 0 : i32
    %c0_i32_1 = arith.constant 0 : i32
    return %c0_i32, %c0_i32_0 : i32, i32
  }
  func.func @transform_3(%arg0: i32) -> (i32, i32) {
    %c0_i32 = arith.constant 0 : i32
    %c0_i32_0 = arith.constant 0 : i32
    %c0_i32_1 = arith.constant 0 : i32
    return %c0_i32, %c0_i32_0 : i32, i32
  }
  func.func @transform_4(%arg0: i32) -> (i32, i32) {
    %c0_i32 = arith.constant 0 : i32
    %c0_i32_0 = arith.constant 0 : i32
    %c0_i32_1 = arith.constant 0 : i32
    return %c0_i32, %c0_i32_0 : i32, i32
  }
  func.func @transform_5(%arg0: i32) -> (i32, i32) {
    %c0_i32 = arith.constant 0 : i32
    %c0_i32_0 = arith.constant 0 : i32
    %c0_i32_1 = arith.constant 0 : i32
    return %c0_i32, %c0_i32_0 : i32, i32
  }
  func.func @transform_6(%arg0: i32) -> (i32, i32) {
    %c0_i32 = arith.constant 0 : i32
    %c0_i32_0 = arith.constant 0 : i32
    return %c0_i32, %arg0 : i32, i32
  }
}

</mosaic_0001>

<llo_original>
// kernel: graphrec_forward.1
$region0: #{graphrec_forward.1}
  #allocation0 [shape = 'u32[]', space=smem, size = 0x4, offset = 0x4, fixed_abs, tag = 'smem constant byte address 0x4 - core index']
  #allocation1 [shape = 'u32[144,128]{1,0:T(1,128)}', space=vmem, size = 0x12000, scoped, tag = 'internal scratch']
  %s0 = inlined_call_operand.vmem [shape: f32[128,16], index: 0, kind: input, shape index: {}]
  %s1 = inlined_call_operand.vmem [shape: f32[128,24], index: 1, kind: input, shape index: {}]
  %s2 = inlined_call_operand.vmem [shape: f32[32,16], index: 2, kind: input, shape index: {}]
  %s3 = inlined_call_operand.vmem [shape: f32[32,24], index: 3, kind: input, shape index: {}]
  %s4 = inlined_call_operand.vmem [shape: f32[32,1], index: 4, kind: input, shape index: {}]
  %s5 = inlined_call_operand.vmem [shape: f32[32,1], index: 5, kind: input, shape index: {}]
  %s6 = inlined_call_operand.vmem [shape: f32[3,128], index: 6, kind: output, shape index: {}]
  %s7 = sld [smem:[#allocation0]]
  $region34: #{graphrec_forward.1} parent=0
    _
  %s9 = ssub.s32 1, %s7
  %s10 = scalar_select 0, %s9, %s7
  // Predicated region
  $region2: #{graphrec_forward.1} parent=0 // pred_check
    _
  $region3: #{graphrec_forward.1} parent=0 // pred_check_branch
    %12 = sbr.rel (0) target = $region5
  $region4: #{graphrec_forward.1} parent=0 // pred_region
    _
  $region5: #{graphrec_forward.1} parent=0 // pred_fallthru
    _
  // Predicated region
  $region6: #{graphrec_forward.1} parent=0 // pred_check
    _
  $region7: #{graphrec_forward.1} parent=0 // pred_check_branch
    %14 = sbr.rel (0) target = $region9
  $region8: #{graphrec_forward.1} parent=0 // pred_region
    _
  $region9: #{graphrec_forward.1} parent=0 // pred_fallthru
    _
  // Predicated region
  $region10: #{graphrec_forward.1} parent=0 // pred_check
    _
  $region11: #{graphrec_forward.1} parent=0 // pred_check_branch
    %16 = sbr.rel (0) target = $region13
  $region12: #{graphrec_forward.1} parent=0 // pred_region
    _
  $region13: #{graphrec_forward.1} parent=0 // pred_fallthru
    _
  // Predicated region
  $region14: #{graphrec_forward.1} parent=0 // pred_check
    _
  $region15: #{graphrec_forward.1} parent=0 // pred_check_branch
    %18 = sbr.rel (0) target = $region17
  $region16: #{graphrec_forward.1} parent=0 // pred_region
    _
  $region17: #{graphrec_forward.1} parent=0 // pred_fallthru
    _
  // Predicated region
  $region18: #{graphrec_forward.1} parent=0 // pred_check
    _
  $region19: #{graphrec_forward.1} parent=0 // pred_check_branch
    %20 = sbr.rel (0) target = $region21
  $region20: #{graphrec_forward.1} parent=0 // pred_region
    _
  $region21: #{graphrec_forward.1} parent=0 // pred_fallthru
    _
  // Predicated region
  $region22: #{graphrec_forward.1} parent=0 // pred_check
    _
  $region23: #{graphrec_forward.1} parent=0 // pred_check_branch
    %22 = sbr.rel (0) target = $region25
  $region24: #{graphrec_forward.1} parent=0 // pred_region
    _
  $region25: #{graphrec_forward.1} parent=0 // pred_fallthru
    _
  %v23 = vld [vmem:[%s2] sm:$0xff]
  %v24 = vld [vmem:[%s2 + $0x8] sm:$0xff]
  %v25 = vld [vmem:[%s2 + $0x10] sm:$0xff]
  %v26 = vld [vmem:[%s2 + $0x18] sm:$0xff]
  %v27 = vld [vmem:[%s0] sm:$0xff]
  %v28 = vld [vmem:[%s0 + $0x8] sm:$0xff]
  %v29 = vld [vmem:[%s0 + $0x10] sm:$0xff]
  %v30 = vld [vmem:[%s0 + $0x18] sm:$0xff]
  %v31 = vld [vmem:[%s0 + $0x20] sm:$0xff]
  %v32 = vld [vmem:[%s0 + $0x28] sm:$0xff]
  %v33 = vld [vmem:[%s0 + $0x30] sm:$0xff]
  %v34 = vld [vmem:[%s0 + $0x38] sm:$0xff]
  %v35 = vld [vmem:[%s0 + $0x40] sm:$0xff]
  %v36 = vld [vmem:[%s0 + $0x48] sm:$0xff]
  %v37 = vld [vmem:[%s0 + $0x50] sm:$0xff]
  %v38 = vld [vmem:[%s0 + $0x58] sm:$0xff]
  %v39 = vld [vmem:[%s0 + $0x60] sm:$0xff]
  %v40 = vld [vmem:[%s0 + $0x68] sm:$0xff]
  %v41 = vld [vmem:[%s0 + $0x70] sm:$0xff]
  %v42 = vld [vmem:[%s0 + $0x78] sm:$0xff]
  %v43 = vld [vmem:[%s4] sm:$0xff]
  %v44 = vld [vmem:[%s4 + $0x8] sm:$0xff]
  %v45 = vld [vmem:[%s4 + $0x10] sm:$0xff]
  %v46 = vld [vmem:[%s4 + $0x18] sm:$0xff]
  %48 = vset.pattern.permute.xlu0 0
  %49 = vperm.xlu0 %48, %v43
  %v50 = vpop.permute.xlu0 %49
  %53 = vset.pattern.permute.xlu0 0
  %54 = vperm.xlu0 %53, %v44
  %v55 = vpop.permute.xlu0 %54
  %58 = vset.pattern.permute.xlu0 0
  %59 = vperm.xlu0 %58, %v45
  %v60 = vpop.permute.xlu0 %59
  %63 = vset.pattern.permute.xlu0 0
  %64 = vperm.xlu0 %63, %v46
  %v65 = vpop.permute.xlu0 %64
  %vm67 = vcmask 130048
  %v69 = vsel %vm67, %v23, 0
  %v72 = vsel %vm67, %v24, 0
  %v75 = vsel %vm67, %v25, 0
  %v78 = vsel %vm67, %v26, 0
  %v81 = vsel %vm67, %v27, 0
  %v84 = vsel %vm67, %v28, 0
  %v87 = vsel %vm67, %v29, 0
  %v90 = vsel %vm67, %v30, 0
  %v93 = vsel %vm67, %v31, 0
  %v96 = vsel %vm67, %v32, 0
  %v99 = vsel %vm67, %v33, 0
  %v102 = vsel %vm67, %v34, 0
  %v105 = vsel %vm67, %v35, 0
  %v108 = vsel %vm67, %v36, 0
  %v111 = vsel %vm67, %v37, 0
  %v114 = vsel %vm67, %v38, 0
  %v117 = vsel %vm67, %v39, 0
  %v120 = vsel %vm67, %v40, 0
  %v123 = vsel %vm67, %v41, 0
  %v126 = vsel %vm67, %v42, 0
  %128 = vmatprep.subr.mxu0 0.0
  %129 = vmatpush1.xpose.msra.mxu0 %v81
  %130 = vmatprep.subr.mxu0 0.0
  %131 = vmatpush1.xpose.msra.mxu0 %v84
  %132 = vmatprep.subr.mxu0 0.0
  %133 = vmatpush1.xpose.msra.mxu0 %v87
  %134 = vmatprep.subr.mxu0 0.0
  %135 = vmatpush1.xpose.msra.mxu0 %v90
  %136 = vmatprep.subr.mxu0 0.0
  %137 = vmatpush1.xpose.msra.mxu0 %v93
  %138 = vmatprep.subr.mxu0 0.0
  %139 = vmatpush1.xpose.msra.mxu0 %v96
  %140 = vmatprep.subr.mxu0 0.0
  %141 = vmatpush1.xpose.msra.mxu0 %v99
  %142 = vmatprep.subr.mxu0 0.0
  %143 = vmatpush1.xpose.msra.mxu0 %v102
  %144 = vmatprep.subr.mxu0 0.0
  %145 = vmatpush1.xpose.msra.mxu0 %v105
  %146 = vmatprep.subr.mxu0 0.0
  %147 = vmatpush1.xpose.msra.mxu0 %v108
  %148 = vmatprep.subr.mxu0 0.0
  %149 = vmatpush1.xpose.msra.mxu0 %v111
  %150 = vmatprep.subr.mxu0 0.0
  %151 = vmatpush1.xpose.msra.mxu0 %v114
  %152 = vmatprep.subr.mxu0 0.0
  %153 = vmatpush1.xpose.msra.mxu0 %v117
  %154 = vmatprep.subr.mxu0 0.0
  %155 = vmatpush1.xpose.msra.mxu0 %v120
  %156 = vmatprep.subr.mxu0 0.0
  %157 = vmatpush1.xpose.msra.mxu0 %v123
  %158 = vmatprep.subr.mxu0 0.0
  %159 = vmatpush1.xpose.msra.mxu0 %v126
  %160 = vmatprep.subr.mxu0 0.0
  %161 = vmatpush1.xpose.msra.mxu0 0.0
  %162 = vmatprep.subr.mxu0 0.0
  %163 = vmatpush1.xpose.msra.mxu0 0.0
  %164 = vmatprep.subr.mxu0 0.0
  %165 = vmatpush1.xpose.msra.mxu0 0.0
  %166 = vmatprep.subr.mxu0 0.0
  %167 = vmatpush1.xpose.msra.mxu0 0.0
  %168 = vmatprep.subr.mxu0 0.0
  %169 = vmatpush1.xpose.msra.mxu0 0.0
  %170 = vmatprep.subr.mxu0 0.0
  %171 = vmatpush1.xpose.msra.mxu0 0.0
  %172 = vmatprep.subr.mxu0 0.0
  %173 = vmatpush1.xpose.msra.mxu0 0.0
  %174 = vmatprep.subr.mxu0 0.0
  %175 = vmatpush1.xpose.msra.mxu0 0.0
  %176 = vmatprep.subr.mxu0 0.0
  %177 = vmatpush1.xpose.msra.mxu0 0.0
  %178 = vmatprep.subr.mxu0 0.0
  %179 = vmatpush1.xpose.msra.mxu0 0.0
  %180 = vmatprep.subr.mxu0 0.0
  %181 = vmatpush1.xpose.msra.mxu0 0.0
  %182 = vmatprep.subr.mxu0 0.0
  %183 = vmatpush1.xpose.msra.mxu0 0.0
  %184 = vmatprep.subr.mxu0 0.0
  %185 = vmatpush1.xpose.msra.mxu0 0.0
  %186 = vmatprep.subr.mxu0 0.0
  %187 = vmatpush1.xpose.msra.mxu0 0.0
  %188 = vmatprep.subr.mxu0 0.0
  %189 = vmatpush1.xpose.msra.mxu0 0.0
  %190 = vmatprep.subr.mxu0 0.0
  %191 = vmatpush1.xpose.msra.mxu0 0.0
  %192 = vmatprep.mubr.f32.mxu0 0.0
  %193 = vmatmul.mubr.f32.gmra.mrb[0].mxu0 %v69
  %v194 = vpop.f32.mrb[0].mxu0
  %v195 = vadd.f32 %v50, %v194
  %v196 = vpop.f32.mrb[0].mxu0
  %197 = vmatprep.mubr.f32.mxu0 0.0
  %198 = vmatmul.mubr.f32.gmra.mrb[0].mxu0 %v72
  %v199 = vpop.f32.mrb[0].mxu0
  %v200 = vadd.f32 %v55, %v199
  %v201 = vpop.f32.mrb[0].mxu0
  %202 = vmatprep.mubr.f32.mxu0 0.0
  %203 = vmatmul.mubr.f32.gmra.mrb[0].mxu0 %v75
  %v204 = vpop.f32.mrb[0].mxu0
  %v205 = vadd.f32 %v60, %v204
  %v206 = vpop.f32.mrb[0].mxu0
  %207 = vmatprep.mubr.f32.mxu0 0.0
  %208 = vmatmul.mubr.f32.gmra.mrb[0].mxu0 %v78
  %v209 = vpop.f32.mrb[0].mxu0
  %v210 = vadd.f32 %v65, %v209
  %v211 = vpop.f32.mrb[0].mxu0
  %212 = vdwg.mxu0
  %v213 = vld [vmem:[%s3] sm:$0xff]
  %v214 = vld [vmem:[%s3 + $0x8] sm:$0xff]
  %v215 = vld [vmem:[%s3 + $0x10] sm:$0xff]
  %v216 = vld [vmem:[%s3 + $0x18] sm:$0xff]
  %v217 = vld [vmem:[%s1] sm:$0xff]
  %v218 = vld [vmem:[%s1 + $0x8] sm:$0xff]
  %v219 = vld [vmem:[%s1 + $0x10] sm:$0xff]
  %v220 = vld [vmem:[%s1 + $0x18] sm:$0xff]
  %v221 = vld [vmem:[%s1 + $0x20] sm:$0xff]
  %v222 = vld [vmem:[%s1 + $0x28] sm:$0xff]
  %v223 = vld [vmem:[%s1 + $0x30] sm:$0xff]
  %v224 = vld [vmem:[%s1 + $0x38] sm:$0xff]
  %v225 = vld [vmem:[%s1 + $0x40] sm:$0xff]
  %v226 = vld [vmem:[%s1 + $0x48] sm:$0xff]
  %v227 = vld [vmem:[%s1 + $0x50] sm:$0xff]
  %v228 = vld [vmem:[%s1 + $0x58] sm:$0xff]
  %v229 = vld [vmem:[%s1 + $0x60] sm:$0xff]
  %v230 = vld [vmem:[%s1 + $0x68] sm:$0xff]
  %v231 = vld [vmem:[%s1 + $0x70] sm:$0xff]
  %v232 = vld [vmem:[%s1 + $0x78] sm:$0xff]
  %v233 = vld [vmem:[%s5] sm:$0xff]
  %v234 = vld [vmem:[%s5 + $0x8] sm:$0xff]
  %v235 = vld [vmem:[%s5 + $0x10] sm:$0xff]
  %v236 = vld [vmem:[%s5 + $0x18] sm:$0xff]
  %238 = vset.pattern.permute.xlu0 0
  %239 = vperm.xlu0 %238, %v233
  %v240 = vpop.permute.xlu0 %239
  %243 = vset.pattern.permute.xlu0 0
  %244 = vperm.xlu0 %243, %v234
  %v245 = vpop.permute.xlu0 %244
  %248 = vset.pattern.permute.xlu0 0
  %249 = vperm.xlu0 %248, %v235
  %v250 = vpop.permute.xlu0 %249
  %253 = vset.pattern.permute.xlu0 0
  %254 = vperm.xlu0 %253, %v236
  %v255 = vpop.permute.xlu0 %254
  %vm257 = vcmask 195584
  %v259 = vsel %vm257, %v213, 0
  %v262 = vsel %vm257, %v214, 0
  %v265 = vsel %vm257, %v215, 0
  %v268 = vsel %vm257, %v216, 0
  %v271 = vsel %vm257, %v217, 0
  %v274 = vsel %vm257, %v218, 0
  %v277 = vsel %vm257, %v219, 0
  %v280 = vsel %vm257, %v220, 0
  %v283 = vsel %vm257, %v221, 0
  %v286 = vsel %vm257, %v222, 0
  %v289 = vsel %vm257, %v223, 0
  %v292 = vsel %vm257, %v224, 0
  %v295 = vsel %vm257, %v225, 0
  %v298 = vsel %vm257, %v226, 0
  %v301 = vsel %vm257, %v227, 0
  %v304 = vsel %vm257, %v228, 0
  %v307 = vsel %vm257, %v229, 0
  %v310 = vsel %vm257, %v230, 0
  %v313 = vsel %vm257, %v231, 0
  %v316 = vsel %vm257, %v232, 0
  %318 = vmatprep.subr.mxu0 0.0
  %319 = vmatpush1.xpose.msra.mxu0 %v271
  %320 = vmatprep.subr.mxu0 0.0
  %321 = vmatpush1.xpose.msra.mxu0 %v274
  %322 = vmatprep.subr.mxu0 0.0
  %323 = vmatpush1.xpose.msra.mxu0 %v277
  %324 = vmatprep.subr.mxu0 0.0
  %325 = vmatpush1.xpose.msra.mxu0 %v280
  %326 = vmatprep.subr.mxu0 0.0
  %327 = vmatpush1.xpose.msra.mxu0 %v283
  %328 = vmatprep.subr.mxu0 0.0
  %329 = vmatpush1.xpose.msra.mxu0 %v286
  %330 = vmatprep.subr.mxu0 0.0
  %331 = vmatpush1.xpose.msra.mxu0 %v289
  %332 = vmatprep.subr.mxu0 0.0
  %333 = vmatpush1.xpose.msra.mxu0 %v292
  %334 = vmatprep.subr.mxu0 0.0
  %335 = vmatpush1.xpose.msra.mxu0 %v295
  %336 = vmatprep.subr.mxu0 0.0
  %337 = vmatpush1.xpose.msra.mxu0 %v298
  %338 = vmatprep.subr.mxu0 0.0
  %339 = vmatpush1.xpose.msra.mxu0 %v301
  %340 = vmatprep.subr.mxu0 0.0
  %341 = vmatpush1.xpose.msra.mxu0 %v304
  %342 = vmatprep.subr.mxu0 0.0
  %343 = vmatpush1.xpose.msra.mxu0 %v307
  %344 = vmatprep.subr.mxu0 0.0
  %345 = vmatpush1.xpose.msra.mxu0 %v310
  %346 = vmatprep.subr.mxu0 0.0
  %347 = vmatpush1.xpose.msra.mxu0 %v313
  %348 = vmatprep.subr.mxu0 0.0
  %349 = vmatpush1.xpose.msra.mxu0 %v316
  %350 = vmatprep.subr.mxu0 0.0
  %351 = vmatpush1.xpose.msra.mxu0 0.0
  %352 = vmatprep.subr.mxu0 0.0
  %353 = vmatpush1.xpose.msra.mxu0 0.0
  %354 = vmatprep.subr.mxu0 0.0
  %355 = vmatpush1.xpose.msra.mxu0 0.0
  %356 = vmatprep.subr.mxu0 0.0
  %357 = vmatpush1.xpose.msra.mxu0 0.0
  %358 = vmatprep.subr.mxu0 0.0
  %359 = vmatpush1.xpose.msra.mxu0 0.0
  %360 = vmatprep.subr.mxu0 0.0
  %361 = vmatpush1.xpose.msra.mxu0 0.0
  %362 = vmatprep.subr.mxu0 0.0
  %363 = vmatpush1.xpose.msra.mxu0 0.0
  %364 = vmatprep.subr.mxu0 0.0
  %365 = vmatpush1.xpose.msra.mxu0 0.0
  %366 = vmatprep.subr.mxu0 0.0
  %367 = vmatpush1.xpose.msra.mxu0 0.0
  %368 = vmatprep.subr.mxu0 0.0
  %369 = vmatpush1.xpose.msra.mxu0 0.0
  %370 = vmatprep.subr.mxu0 0.0
  %371 = vmatpush1.xpose.msra.mxu0 0.0
  %372 = vmatprep.subr.mxu0 0.0
  %373 = vmatpush1.xpose.msra.mxu0 0.0
  %374 = vmatprep.subr.mxu0 0.0
  %375 = vmatpush1.xpose.msra.mxu0 0.0
  %376 = vmatprep.subr.mxu0 0.0
  %377 = vmatpush1.xpose.msra.mxu0 0.0
  %378 = vmatprep.subr.mxu0 0.0
  %379 = vmatpush1.xpose.msra.mxu0 0.0
  %380 = vmatprep.subr.mxu0 0.0
  %381 = vmatpush1.xpose.msra.mxu0 0.0
  %382 = vmatprep.mubr.f32.mxu0 0.0
  %383 = vmatmul.mubr.f32.gmra.mrb[0].mxu0 %v259
  %v384 = vpop.f32.mrb[0].mxu0
  %v385 = vadd.f32 %v240, %v384
  %v386 = vpop.f32.mrb[0].mxu0
  %387 = vmatprep.mubr.f32.mxu0 0.0
  %388 = vmatmul.mubr.f32.gmra.mrb[0].mxu0 %v262
  %v389 = vpop.f32.mrb[0].mxu0
  %v390 = vadd.f32 %v245, %v389
  %v391 = vpop.f32.mrb[0].mxu0
  %392 = vmatprep.mubr.f32.mxu0 0.0
  %393 = vmatmul.mubr.f32.gmra.mrb[0].mxu0 %v265
  %v394 = vpop.f32.mrb[0].mxu0
  %v395 = vadd.f32 %v250, %v394
  %v396 = vpop.f32.mrb[0].mxu0
  %397 = vmatprep.mubr.f32.mxu0 0.0
  %398 = vmatmul.mubr.f32.gmra.mrb[0].mxu0 %v268
  %v399 = vpop.f32.mrb[0].mxu0
  %v400 = vadd.f32 %v255, %v399
  %v401 = vpop.f32.mrb[0].mxu0
  %402 = vdwg.mxu0
  %v403 = vmul.f32 %v195, %v385
  %v404 = vmul.f32 %v200, %v390
  %v405 = vmul.f32 %v205, %v395
  %v406 = vmul.f32 %v210, %v400
  %v407 = vmax.f32 %v403, 0.0
  %v408 = vmax.f32 %v404, 0.0
  %v409 = vmax.f32 %v405, 0.0
  %v410 = vmax.f32 %v406, 0.0
  %v411 = vadd.f32 %v407, %v408
  %v412 = vadd.f32 %v411, %v409
  %v413 = vadd.f32 %v412, %v410
  %v414 = vrot.slane %v413, 4
  %v415 = vadd.f32 %v413, %v414
  %v416 = vrot.slane %v415, 2
  %v417 = vadd.f32 %v415, %v416
  %v418 = vrot.slane %v417, 1
  %v419 = vadd.f32 %v417, %v418
  %v420 = vmul.f32 %v195, %v195
  %v421 = vmul.f32 %v200, %v200
  %v422 = vmul.f32 %v205, %v205
  %v423 = vmul.f32 %v210, %v210
  %v424 = vadd.f32 %v420, %v421
  %v425 = vadd.f32 %v424, %v422
  %v426 = vadd.f32 %v425, %v423
  %v427 = vrot.slane %v426, 4
  %v428 = vadd.f32 %v426, %v427
  %v429 = vrot.slane %v428, 2
  %v430 = vadd.f32 %v428, %v429
  %v431 = vrot.slane %v430, 1
  %v432 = vadd.f32 %v430, %v431
  %v433 = vmul.f32 %v385, %v385
  %v434 = vmul.f32 %v390, %v390
  %v435 = vmul.f32 %v395, %v395
  %v436 = vmul.f32 %v400, %v400
  %v437 = vadd.f32 %v433, %v434
  %v438 = vadd.f32 %v437, %v435
  %v439 = vadd.f32 %v438, %v436
  %v440 = vrot.slane %v439, 4
  %v441 = vadd.f32 %v439, %v440
  %v442 = vrot.slane %v441, 2
  %v443 = vadd.f32 %v441, %v442
  %v444 = vrot.slane %v443, 1
  %v445 = vadd.f32 %v443, %v444
  %vm446 = vcmask 1040384
  %v447 = vsel %vm446, %v419, %v432
  %vm448 = vcmask 1041408
  %v449 = vsel %vm448, %v447, %v445
  %450 = vst [vmem:[%s6] sm:$0x7] %v449
  // Predicated region
  $region26: #{graphrec_forward.1} parent=0 // pred_check
    _
  $region27: #{graphrec_forward.1} parent=0 // pred_check_branch
    %452 = sbr.rel (0) target = $region29
  $region28: #{graphrec_forward.1} parent=0 // pred_region
    _
  $region29: #{graphrec_forward.1} parent=0 // pred_fallthru
    _
  // Predicated region
  $region30: #{graphrec_forward.1} parent=0 // pred_check
    _
  $region31: #{graphrec_forward.1} parent=0 // pred_check_branch
    %454 = sbr.rel (0) target = $region33
  $region32: #{graphrec_forward.1} parent=0 // pred_region
    _
  $region33: #{graphrec_forward.1} parent=0 // pred_fallthru
    _

</llo_original>
